<compile_context>
chip_gen: v5e
topology: v5e:2x2
jax: 0.10.0
libtpu: 0.0.40
codegen_flags: <defaults>
</compile_context>

<pallas_src>
import functools

import jax
import jax.numpy as jnp
from jax.experimental import pallas as pl
from jax.experimental.pallas import tpu as pltpu


def _deep_mlp_kernel(x_ref, w1_ref, b1_ref, w2_ref, b2_ref, w3_ref, b3_ref,
                     w4_ref, b4_ref, o_ref):
    """Fused MLP on one batch tile (batch in lanes): 3x (Linear+ReLU) + Linear + Sigmoid."""
    cdt = w1_ref.dtype                                   # compute dtype (bf16 or f32)
    x = x_ref[...].astype(cdt)                           # (d_in, tb), lane-dense

    # Layer 1: h = W1 @ x  (MXU, f32 accumulation), bias + ReLU in f32, carry in cdt.
    h = jnp.dot(w1_ref[...], x, preferred_element_type=jnp.float32)        # (64, tb)
    h = jnp.maximum(h + b1_ref[...], 0.0).astype(cdt)
    # Layer 2
    h = jnp.dot(w2_ref[...], h, preferred_element_type=jnp.float32)        # (32, tb)
    h = jnp.maximum(h + b2_ref[...], 0.0).astype(cdt)
    # Layer 3
    h = jnp.dot(w3_ref[...], h, preferred_element_type=jnp.float32)        # (16, tb)
    h = jnp.maximum(h + b3_ref[...], 0.0).astype(cdt)
    # Output layer + Sigmoid (f32; exp lands on the otherwise-idle EUP slot).
    z = jnp.dot(w4_ref[...], h, preferred_element_type=jnp.float32) + b4_ref[...]
    o_ref[...] = (1.0 / (1.0 + jnp.exp(-z))).astype(o_ref.dtype)           # (1, tb)


def _round_up(n, m):
    return ((n + m - 1) // m) * m


def _pick_batch_tile(batch, block_batch):
    """Lane-dense batch tile: multiple of 128 (or the full batch), >=2 grid steps when possible."""
    if batch <= 256:
        return batch                                  # single full-extent block
    tb = min(block_batch, _round_up(batch, 128))
    if tb >= batch:
        # Keep at least 2 grid steps so "parallel" can shard across v7x's two TensorCores.
        tb = _round_up(pl.cdiv(batch, 2), 128)
    return tb


@functools.partial(jax.jit, static_argnames=("compute_dtype", "block_batch"))
def deep_mlp_forward(x, params, *, compute_dtype=jnp.bfloat16, block_batch=32768):
    """Forward pass of DeepMLPClassifier.

    x: (B, input_dim) float32.
    params: PyTorch-convention weights:
        w1:(64,2) b1:(64,)  w2:(32,64) b2:(32,)  w3:(16,32) b3:(16,)  w4:(1,16) b4:(1,)
    Returns sigmoid probabilities of shape (B, output_dim).
    """
    B, d_in = x.shape
    x_t = x.T                                          # (d_in, B): batch in lanes

    # PyTorch Linear weights are (out, in): exactly the orientation for h = W @ x.
    ws = [params[f"w{i}"].astype(compute_dtype) for i in range(1, 5)]
    bs = [params[f"b{i}"].reshape(-1, 1).astype(jnp.float32) for i in range(1, 5)]
    d_out = ws[-1].shape[0]

    tb = _pick_batch_tile(B, block_batch)
    grid = (pl.cdiv(B, tb),)

    def _resident(shape):
        # One block == whole array, constant index_map -> stays VMEM-resident
        # across all batch tiles (no re-DMA of weights/biases).
        return pl.BlockSpec(shape, lambda i: (0, 0))

    in_specs = [pl.BlockSpec((d_in, tb), lambda i: (0, i))]
    operands = [x_t]
    for w, b in zip(ws, bs):
        in_specs += [_resident(w.shape), _resident(b.shape)]
        operands += [w, b]

    out_t = pl.pallas_call(
        _deep_mlp_kernel,
        out_shape=jax.ShapeDtypeStruct((d_out, B), jnp.float32),
        grid_spec=pltpu.PrefetchScalarGridSpec(
            num_scalar_prefetch=0,
            grid=grid,
            in_specs=in_specs,
            out_specs=pl.BlockSpec((d_out, tb), lambda i: (0, i)),
        ),
        compiler_params=pltpu.CompilerParams(
            dimension_semantics=("parallel",),
            vmem_limit_bytes=40 * 1024 * 1024,
        ),
    )(*operands)
    return out_t.T                                     # (B, d_out)


def init_params(key, input_dim=2, hidden_dims=(64, 32, 16), output_dim=1):
    """Synthetic params with PyTorch Linear conventions: weight (out, in), U(-1/sqrt(fan_in), ...)."""
    dims = [input_dim] + list(hidden_dims) + [output_dim]
    params = {}
    keys = jax.random.split(key, len(dims) - 1)
    for i, (fan_in, fan_out) in enumerate(zip(dims[:-1], dims[1:]), start=1):
        kw, kb = jax.random.split(keys[i - 1])
        bound = 1.0 / float(fan_in) ** 0.5
        params[f"w{i}"] = jax.random.uniform(
            kw, (fan_out, fan_in), jnp.float32, minval=-bound, maxval=bound)
        params[f"b{i}"] = jax.random.uniform(
            kb, (fan_out,), jnp.float32, minval=-bound, maxval=bound)
    return params


def _reference_forward(x, params):
    """Pure-JAX reference (matches the PyTorch module)."""
    h = x
    for i in range(1, 4):
        h = jnp.maximum(h @ params[f"w{i}"].T + params[f"b{i}"], 0.0)
    z = h @ params["w4"].T + params["b4"]
    return jax.nn.sigmoid(z)


if __name__ == "__main__":
    key = jax.random.PRNGKey(0)
    kx, kp = jax.random.split(key)

    batch, input_dim = 2, 2
    hidden_dims = (64, 32, 16)
    output_dim = 1

    x = jax.random.normal(kx, (batch, input_dim), dtype=jnp.float32)
    params = init_params(kp, input_dim, hidden_dims, output_dim)

    ref = _reference_forward(x, params)

    # f32 path: tight numerical check.
    out_f32 = deep_mlp_forward(x, params, compute_dtype=jnp.float32)
    jax.block_until_ready(out_f32)
    assert out_f32.shape == (batch, output_dim)
    assert jnp.allclose(out_f32, ref, atol=1e-5, rtol=1e-5)

    # Default bf16 fast path: bf16 matmul operands / activations, f32 accumulation.
    out_bf16 = deep_mlp_forward(x, params)
    jax.block_until_ready(out_bf16)
    assert out_bf16.shape == (batch, output_dim)
    assert jnp.allclose(out_bf16, ref, atol=2e-2, rtol=2e-2)

    # Multi-tile + partial-last-block path (grid=3, last block only 44/128 valid columns):
    # verifies the no-pad ragged handling against the reference.
    xb = jax.random.normal(kx, (300, input_dim), dtype=jnp.float32)
    refb = _reference_forward(xb, params)
    outb = deep_mlp_forward(xb, params, compute_dtype=jnp.float32, block_batch=128)
    jax.block_until_ready(outb)
    assert outb.shape == (300, output_dim)
    assert jnp.allclose(outb, refb, atol=1e-5, rtol=1e-5)

    print("KERNEL_OK")
</pallas_src>

<mosaic_0001>
module attributes {stable_mosaic.version = 11 : i64} {
  func.func @_deep_mlp_kernel(%arg0: i32, %arg1: memref<2x2xf32, #tpu.memory_space<vmem>>, %arg2: memref<64x2xf32, #tpu.memory_space<vmem>>, %arg3: memref<64x1xf32, #tpu.memory_space<vmem>>, %arg4: memref<32x64xf32, #tpu.memory_space<vmem>>, %arg5: memref<32x1xf32, #tpu.memory_space<vmem>>, %arg6: memref<16x32xf32, #tpu.memory_space<vmem>>, %arg7: memref<16x1xf32, #tpu.memory_space<vmem>>, %arg8: memref<1x16xf32, #tpu.memory_space<vmem>>, %arg9: memref<1x1xf32, #tpu.memory_space<vmem>>, %arg10: memref<1x2xf32, #tpu.memory_space<vmem>>) attributes {dimension_semantics = [#tpu.dimension_semantics<parallel>], iteration_bounds = array<i64: 1>, scalar_prefetch = 0 : i64, scratch_operands = 0 : i64, tpu.core_type = #tpu.core_type<tc>, window_params = [{transform_indices = @transform_0, window_bounds = array<i64: 2, 2>}, {pipeline_mode = #tpu.pipeline_mode<synchronous>, transform_indices = @transform_1, window_bounds = array<i64: 64, 2>}, {pipeline_mode = #tpu.pipeline_mode<synchronous>, transform_indices = @transform_2, window_bounds = array<i64: 64, 1>}, {pipeline_mode = #tpu.pipeline_mode<synchronous>, transform_indices = @transform_3, window_bounds = array<i64: 32, 64>}, {pipeline_mode = #tpu.pipeline_mode<synchronous>, transform_indices = @transform_4, window_bounds = array<i64: 32, 1>}, {pipeline_mode = #tpu.pipeline_mode<synchronous>, transform_indices = @transform_5, window_bounds = array<i64: 16, 32>}, {pipeline_mode = #tpu.pipeline_mode<synchronous>, transform_indices = @transform_6, window_bounds = array<i64: 16, 1>}, {pipeline_mode = #tpu.pipeline_mode<synchronous>, transform_indices = @transform_7, window_bounds = array<i64: 1, 16>}, {pipeline_mode = #tpu.pipeline_mode<synchronous>, transform_indices = @transform_8, window_bounds = array<i64: 1, 1>}, {transform_indices = @transform_9, window_bounds = array<i64: 1, 2>}]} {
    %c0 = arith.constant 0 : index
    %c0_0 = arith.constant 0 : index
    %0 = vector.load %arg1[%c0, %c0_0] : memref<2x2xf32, #tpu.memory_space<vmem>>, vector<2x2xf32>
    %c0_1 = arith.constant 0 : index
    %c0_2 = arith.constant 0 : index
    %1 = vector.load %arg2[%c0_1, %c0_2] : memref<64x2xf32, #tpu.memory_space<vmem>>, vector<64x2xf32>
    %cst = arith.constant dense<0.000000e+00> : vector<64x2xf32>
    %2 = tpu.matmul %1, %0, %cst {dimension_numbers = #tpu.dot_dimension_numbers<[1], [0], [0], [1], [0, 0, 1, 1], [], []>} : vector<64x2xf32>, vector<2x2xf32>, vector<64x2xf32> -> vector<64x2xf32>
    %c0_3 = arith.constant 0 : index
    %c0_4 = arith.constant 0 : index
    %3 = vector.load %arg3[%c0_3, %c0_4] : memref<64x1xf32, #tpu.memory_space<vmem>>, vector<64x1xf32>
    %4 = vector.broadcast %3 : vector<64x1xf32> to vector<64x2xf32>
    %5 = arith.addf %2, %4 : vector<64x2xf32>
    %cst_5 = arith.constant 0.000000e+00 : f32
    %6 = vector.broadcast %cst_5 : f32 to vector<64x2xf32>
    %7 = arith.maximumf %5, %6 : vector<64x2xf32>
    %c0_6 = arith.constant 0 : index
    %c0_7 = arith.constant 0 : index
    %8 = vector.load %arg4[%c0_6, %c0_7] : memref<32x64xf32, #tpu.memory_space<vmem>>, vector<32x64xf32>
    %cst_8 = arith.constant dense<0.000000e+00> : vector<32x2xf32>
    %9 = tpu.matmul %8, %7, %cst_8 {dimension_numbers = #tpu.dot_dimension_numbers<[1], [0], [0], [1], [0, 0, 1, 1], [], []>} : vector<32x64xf32>, vector<64x2xf32>, vector<32x2xf32> -> vector<32x2xf32>
    %c0_9 = arith.constant 0 : index
    %c0_10 = arith.constant 0 : index
    %10 = vector.load %arg5[%c0_9, %c0_10] : memref<32x1xf32, #tpu.memory_space<vmem>>, vector<32x1xf32>
    %11 = vector.broadcast %10 : vector<32x1xf32> to vector<32x2xf32>
    %12 = arith.addf %9, %11 : vector<32x2xf32>
    %cst_11 = arith.constant 0.000000e+00 : f32
    %13 = vector.broadcast %cst_11 : f32 to vector<32x2xf32>
    %14 = arith.maximumf %12, %13 : vector<32x2xf32>
    %c0_12 = arith.constant 0 : index
    %c0_13 = arith.constant 0 : index
    %15 = vector.load %arg6[%c0_12, %c0_13] : memref<16x32xf32, #tpu.memory_space<vmem>>, vector<16x32xf32>
    %cst_14 = arith.constant dense<0.000000e+00> : vector<16x2xf32>
    %16 = tpu.matmul %15, %14, %cst_14 {dimension_numbers = #tpu.dot_dimension_numbers<[1], [0], [0], [1], [0, 0, 1, 1], [], []>} : vector<16x32xf32>, vector<32x2xf32>, vector<16x2xf32> -> vector<16x2xf32>
    %c0_15 = arith.constant 0 : index
    %c0_16 = arith.constant 0 : index
    %17 = vector.load %arg7[%c0_15, %c0_16] : memref<16x1xf32, #tpu.memory_space<vmem>>, vector<16x1xf32>
    %18 = vector.broadcast %17 : vector<16x1xf32> to vector<16x2xf32>
    %19 = arith.addf %16, %18 : vector<16x2xf32>
    %cst_17 = arith.constant 0.000000e+00 : f32
    %20 = vector.broadcast %cst_17 : f32 to vector<16x2xf32>
    %21 = arith.maximumf %19, %20 : vector<16x2xf32>
    %c0_18 = arith.constant 0 : index
    %c0_19 = arith.constant 0 : index
    %22 = vector.load %arg8[%c0_18, %c0_19] : memref<1x16xf32, #tpu.memory_space<vmem>>, vector<1x16xf32>
    %cst_20 = arith.constant dense<0.000000e+00> : vector<1x2xf32>
    %23 = tpu.matmul %22, %21, %cst_20 {dimension_numbers = #tpu.dot_dimension_numbers<[1], [0], [0], [1], [0, 0, 1, 1], [], []>} : vector<1x16xf32>, vector<16x2xf32>, vector<1x2xf32> -> vector<1x2xf32>
    %c0_21 = arith.constant 0 : index
    %c0_22 = arith.constant 0 : index
    %24 = vector.load %arg9[%c0_21, %c0_22] : memref<1x1xf32, #tpu.memory_space<vmem>>, vector<1x1xf32>
    %25 = vector.broadcast %24 : vector<1x1xf32> to vector<1x2xf32>
    %26 = arith.addf %23, %25 : vector<1x2xf32>
    %cst_23 = arith.constant 0.000000e+00 : f32
    %27 = vector.broadcast %cst_23 : f32 to vector<1x2xf32>
    %28 = arith.subf %27, %26 : vector<1x2xf32>
    %29 = math.exp %28 : vector<1x2xf32>
    %cst_24 = arith.constant 1.000000e+00 : f32
    %30 = vector.broadcast %cst_24 : f32 to vector<1x2xf32>
    %31 = arith.addf %30, %29 : vector<1x2xf32>
    %cst_25 = arith.constant 1.000000e+00 : f32
    %32 = vector.broadcast %cst_25 : f32 to vector<1x2xf32>
    %33 = arith.divf %32, %31 : vector<1x2xf32>
    %c0_26 = arith.constant 0 : index
    %c0_27 = arith.constant 0 : index
    %34 = vector.load %arg10[%c0_26, %c0_27] : memref<1x2xf32, #tpu.memory_space<vmem>>, vector<1x2xf32>
    tpu.vector_store %arg10[%c0_26, %c0_27], %33 {strides = array<i32>} : memref<1x2xf32, #tpu.memory_space<vmem>>, vector<1x2xf32>,
    return
  }
  func.func @transform_0(%arg0: i32) -> (i32, i32) {
    %c0_i32 = arith.constant 0 : i32
    %c0_i32_0 = arith.constant 0 : i32
    return %c0_i32, %arg0 : i32, i32
  }
  func.func @transform_1(%arg0: i32) -> (i32, i32) {
    %c0_i32 = arith.constant 0 : i32
    %c0_i32_0 = arith.constant 0 : i32
    %c0_i32_1 = arith.constant 0 : i32
    return %c0_i32, %c0_i32_0 : i32, i32
  }
  func.func @transform_2(%arg0: i32) -> (i32, i32) {
    %c0_i32 = arith.constant 0 : i32
    %c0_i32_0 = arith.constant 0 : i32
    %c0_i32_1 = arith.constant 0 : i32
    return %c0_i32, %c0_i32_0 : i32, i32
  }
  func.func @transform_3(%arg0: i32) -> (i32, i32) {
    %c0_i32 = arith.constant 0 : i32
    %c0_i32_0 = arith.constant 0 : i32
    %c0_i32_1 = arith.constant 0 : i32
    return %c0_i32, %c0_i32_0 : i32, i32
  }
  func.func @transform_4(%arg0: i32) -> (i32, i32) {
    %c0_i32 = arith.constant 0 : i32
    %c0_i32_0 = arith.constant 0 : i32
    %c0_i32_1 = arith.constant 0 : i32
    return %c0_i32, %c0_i32_0 : i32, i32
  }
  func.func @transform_5(%arg0: i32) -> (i32, i32) {
    %c0_i32 = arith.constant 0 : i32
    %c0_i32_0 = arith.constant 0 : i32
    %c0_i32_1 = arith.constant 0 : i32
    return %c0_i32, %c0_i32_0 : i32, i32
  }
  func.func @transform_6(%arg0: i32) -> (i32, i32) {
    %c0_i32 = arith.constant 0 : i32
    %c0_i32_0 = arith.constant 0 : i32
    %c0_i32_1 = arith.constant 0 : i32
    return %c0_i32, %c0_i32_0 : i32, i32
  }
  func.func @transform_7(%arg0: i32) -> (i32, i32) {
    %c0_i32 = arith.constant 0 : i32
    %c0_i32_0 = arith.constant 0 : i32
    %c0_i32_1 = arith.constant 0 : i32
    return %c0_i32, %c0_i32_0 : i32, i32
  }
  func.func @transform_8(%arg0: i32) -> (i32, i32) {
    %c0_i32 = arith.constant 0 : i32
    %c0_i32_0 = arith.constant 0 : i32
    %c0_i32_1 = arith.constant 0 : i32
    return %c0_i32, %c0_i32_0 : i32, i32
  }
  func.func @transform_9(%arg0: i32) -> (i32, i32) {
    %c0_i32 = arith.constant 0 : i32
    %c0_i32_0 = arith.constant 0 : i32
    return %c0_i32, %arg0 : i32, i32
  }
}

</mosaic_0001>

<llo_original>
// kernel: deep_mlp_forward.1
$region0: #{deep_mlp_forward.1}
  #allocation0 [shape = 'u32[]', space=smem, size = 0x4, offset = 0x4, fixed_abs, tag = 'smem constant byte address 0x4 - core index']
  #allocation1 [shape = 'u32[72,128]{1,0:T(1,128)}', space=vmem, size = 0x9000, scoped, tag = 'internal scratch']
  #allocation2 [shape = 'f32[1,1]{1,0:T(1,128)S(1)}', space=vmem, size = 0x200, scoped, tag = 'scoped memory for deep_mlp_forward.1']
  %s0 = inlined_call_operand.vmem [shape: f32[2,2], index: 0, kind: input, shape index: {}]
  %s1 = inlined_call_operand.vmem [shape: f32[64,2], index: 1, kind: input, shape index: {}]
  %s2 = inlined_call_operand.vmem [shape: f32[64,1], index: 2, kind: input, shape index: {}]
  %s3 = inlined_call_operand.vmem [shape: f32[32,64], index: 3, kind: input, shape index: {}]
  %s4 = inlined_call_operand.vmem [shape: f32[32,1], index: 4, kind: input, shape index: {}]
  %s5 = inlined_call_operand.vmem [shape: f32[16,32], index: 5, kind: input, shape index: {}]
  %s6 = inlined_call_operand.vmem [shape: f32[16,1], index: 6, kind: input, shape index: {}]
  %s7 = inlined_call_operand.vmem [shape: f32[1,16], index: 7, kind: input, shape index: {}]
  %s8 = inlined_call_operand.<no memory space> [shape: f32[1,1], index: 8, kind: input, shape index: {}]
  %s9 = inlined_call_operand.hbm [shape: f32[1,2], index: 9, kind: output, shape index: {}]
  %s10 = sld [smem:[#allocation0]]
  $region46: #{deep_mlp_forward.1} parent=0
    _
  %s12 = ssub.s32 1, %s10
  %s13 = scalar_select 0, %s12, %s10
  %v14 = vstv %s8
  %15 = vst [vmem:[#allocation2] sm:$0x1] %v14
  $region1: #{deep_mlp_forward.1} parent=0
    #allocation3 [shape = 'u8[512]{0}', space=vmem, size = 0x400, scoped, tag = 'output window, operand 0, single buffered']
    #allocation4 [shape = 's32[1]{0}', space=sflag, size = 0x4, scoped, tag = 'scoped memory for deep_mlp_forward.1']
    %16 = vsyncpa [#allocation4], 0
    // Predicated region
    $region2: #{deep_mlp_forward.1} parent=1 // pred_check
      _
    $region3: #{deep_mlp_forward.1} parent=1 // pred_check_branch
      %18 = sbr.rel (0) target = $region5
    $region4: #{deep_mlp_forward.1} parent=1 // pred_region
      _
    $region5: #{deep_mlp_forward.1} parent=1 // pred_fallthru
      _
    // Predicated region
    $region6: #{deep_mlp_forward.1} parent=1 // pred_check
      _
    $region7: #{deep_mlp_forward.1} parent=1 // pred_check_branch
      %20 = sbr.rel (0) target = $region9
    $region8: #{deep_mlp_forward.1} parent=1 // pred_region
      _
    $region9: #{deep_mlp_forward.1} parent=1 // pred_fallthru
      _
    // Predicated region
    $region10: #{deep_mlp_forward.1} parent=1 // pred_check
      _
    $region11: #{deep_mlp_forward.1} parent=1 // pred_check_branch
      %22 = sbr.rel (0) target = $region13
    $region12: #{deep_mlp_forward.1} parent=1 // pred_region
      _
    $region13: #{deep_mlp_forward.1} parent=1 // pred_fallthru
      _
    // Predicated region
    $region14: #{deep_mlp_forward.1} parent=1 // pred_check
      _
    $region15: #{deep_mlp_forward.1} parent=1 // pred_check_branch
      %24 = sbr.rel (0) target = $region17
    $region16: #{deep_mlp_forward.1} parent=1 // pred_region
      _
    $region17: #{deep_mlp_forward.1} parent=1 // pred_fallthru
      _
    // Predicated region
    $region18: #{deep_mlp_forward.1} parent=1 // pred_check
      _
    $region19: #{deep_mlp_forward.1} parent=1 // pred_check_branch
      %26 = sbr.rel (0) target = $region21
    $region20: #{deep_mlp_forward.1} parent=1 // pred_region
      _
    $region21: #{deep_mlp_forward.1} parent=1 // pred_fallthru
      _
    // Predicated region
    $region22: #{deep_mlp_forward.1} parent=1 // pred_check
      _
    $region23: #{deep_mlp_forward.1} parent=1 // pred_check_branch
      %28 = sbr.rel (0) target = $region25
    $region24: #{deep_mlp_forward.1} parent=1 // pred_region
      _
    $region25: #{deep_mlp_forward.1} parent=1 // pred_fallthru
      _
    // Predicated region
    $region26: #{deep_mlp_forward.1} parent=1 // pred_check
      _
    $region27: #{deep_mlp_forward.1} parent=1 // pred_check_branch
      %30 = sbr.rel (0) target = $region29
    $region28: #{deep_mlp_forward.1} parent=1 // pred_region
      _
    $region29: #{deep_mlp_forward.1} parent=1 // pred_fallthru
      _
    // Predicated region
    $region30: #{deep_mlp_forward.1} parent=1 // pred_check
      _
    $region31: #{deep_mlp_forward.1} parent=1 // pred_check_branch
      %32 = sbr.rel (0) target = $region33
    $region32: #{deep_mlp_forward.1} parent=1 // pred_region
      _
    $region33: #{deep_mlp_forward.1} parent=1 // pred_fallthru
      _
    // Predicated region
    $region34: #{deep_mlp_forward.1} parent=1 // pred_check
      _
    $region35: #{deep_mlp_forward.1} parent=1 // pred_check_branch
      %34 = sbr.rel (0) target = $region37
    $region36: #{deep_mlp_forward.1} parent=1 // pred_region
      _
    $region37: #{deep_mlp_forward.1} parent=1 // pred_fallthru
      _
    %v35 = vld [vmem:[%s0] sm:$0x3]
    %v36 = vld [vmem:[%s1] sm:$0xff]
    %v37 = vld [vmem:[%s1 + $0x8] sm:$0xff]
    %v38 = vld [vmem:[%s1 + $0x10] sm:$0xff]
    %v39 = vld [vmem:[%s1 + $0x18] sm:$0xff]
    %v40 = vld [vmem:[%s1 + $0x20] sm:$0xff]
    %v41 = vld [vmem:[%s1 + $0x28] sm:$0xff]
    %v42 = vld [vmem:[%s1 + $0x30] sm:$0xff]
    %v43 = vld [vmem:[%s1 + $0x38] sm:$0xff]
    %v44 = vld [vmem:[%s2] sm:$0xff]
    %v45 = vld [vmem:[%s2 + $0x8] sm:$0xff]
    %v46 = vld [vmem:[%s2 + $0x10] sm:$0xff]
    %v47 = vld [vmem:[%s2 + $0x18] sm:$0xff]
    %v48 = vld [vmem:[%s2 + $0x20] sm:$0xff]
    %v49 = vld [vmem:[%s2 + $0x28] sm:$0xff]
    %v50 = vld [vmem:[%s2 + $0x30] sm:$0xff]
    %v51 = vld [vmem:[%s2 + $0x38] sm:$0xff]
    %53 = vset.pattern.permute.xlu0 0
    %54 = vperm.xlu0 %53, %v44
    %v55 = vpop.permute.xlu0 %54
    %58 = vset.pattern.permute.xlu0 0
    %59 = vperm.xlu0 %58, %v45
    %v60 = vpop.permute.xlu0 %59
    %63 = vset.pattern.permute.xlu0 0
    %64 = vperm.xlu0 %63, %v46
    %v65 = vpop.permute.xlu0 %64
    %68 = vset.pattern.permute.xlu0 0
    %69 = vperm.xlu0 %68, %v47
    %v70 = vpop.permute.xlu0 %69
    %73 = vset.pattern.permute.xlu0 0
    %74 = vperm.xlu0 %73, %v48
    %v75 = vpop.permute.xlu0 %74
    %78 = vset.pattern.permute.xlu0 0
    %79 = vperm.xlu0 %78, %v49
    %v80 = vpop.permute.xlu0 %79
    %83 = vset.pattern.permute.xlu0 0
    %84 = vperm.xlu0 %83, %v50
    %v85 = vpop.permute.xlu0 %84
    %88 = vset.pattern.permute.xlu0 0
    %89 = vperm.xlu0 %88, %v51
    %v90 = vpop.permute.xlu0 %89
    %vm92 = vcmask 15360
    %v94 = vsel %vm92, %v36, 0
    %v97 = vsel %vm92, %v37, 0
    %v100 = vsel %vm92, %v38, 0
    %v103 = vsel %vm92, %v39, 0
    %v106 = vsel %vm92, %v40, 0
    %v109 = vsel %vm92, %v41, 0
    %v112 = vsel %vm92, %v42, 0
    %v115 = vsel %vm92, %v43, 0
    %vm117 = vcmask 1041408
    %v119 = vsel %vm117, %v35, 0
    %121 = vmatpush.msra.mxu0 0.0
    %122 = vmatpush.msra.mxu0 0.0
    %123 = vmatpush.msra.mxu0 0.0
    %124 = vmatpush.msra.mxu0 0.0
    %125 = vmatpush.msra.mxu0 0.0
    %126 = vmatpush.msra.mxu0 0.0
    %127 = vmatpush.msra.mxu0 0.0
    %128 = vmatpush.msra.mxu0 0.0
    %129 = vmatpush.msra.mxu0 0.0
    %130 = vmatpush.msra.mxu0 0.0
    %131 = vmatpush.msra.mxu0 0.0
    %132 = vmatpush.msra.mxu0 0.0
    %133 = vmatpush.msra.mxu0 0.0
    %134 = vmatpush.msra.mxu0 0.0
    %135 = vmatpush.msra.mxu0 0.0
    %136 = vmatpush.msra.mxu0 %v119
    %137 = vmatmul.f32.gmra.mxu0 %v94
    %v138 = vpop.f32.mrf.mxu0
    %v139 = vadd.f32 %v55, %v138
    %140 = vmatmul.f32.gmra.mxu0 %v97
    %v141 = vpop.f32.mrf.mxu0
    %v142 = vadd.f32 %v60, %v141
    %143 = vmatmul.f32.gmra.mxu0 %v100
    %v144 = vpop.f32.mrf.mxu0
    %v145 = vadd.f32 %v65, %v144
    %146 = vmatmul.f32.gmra.mxu0 %v103
    %v147 = vpop.f32.mrf.mxu0
    %v148 = vadd.f32 %v70, %v147
    %149 = vmatmul.f32.gmra.mxu0 %v106
    %v150 = vpop.f32.mrf.mxu0
    %v151 = vadd.f32 %v75, %v150
    %152 = vmatmul.f32.gmra.mxu0 %v109
    %v153 = vpop.f32.mrf.mxu0
    %v154 = vadd.f32 %v80, %v153
    %155 = vmatmul.f32.gmra.mxu0 %v112
    %v156 = vpop.f32.mrf.mxu0
    %v157 = vadd.f32 %v85, %v156
    %158 = vmatmul.f32.gmra.mxu0 %v115
    %v159 = vpop.f32.mrf.mxu0
    %v160 = vadd.f32 %v90, %v159
    %161 = vdwg.mxu0
    %v162 = vmax.f32 %v139, 0.0
    %v163 = vmax.f32 %v142, 0.0
    %v164 = vmax.f32 %v145, 0.0
    %v165 = vmax.f32 %v148, 0.0
    %v166 = vmax.f32 %v151, 0.0
    %v167 = vmax.f32 %v154, 0.0
    %v168 = vmax.f32 %v157, 0.0
    %v169 = vmax.f32 %v160, 0.0
    %v170 = vld [vmem:[%s3] sm:$0xff]
    %v171 = vld [vmem:[%s3 + $0x8] sm:$0xff]
    %v172 = vld [vmem:[%s3 + $0x10] sm:$0xff]
    %v173 = vld [vmem:[%s3 + $0x18] sm:$0xff]
    %v174 = vld [vmem:[%s4] sm:$0xff]
    %v175 = vld [vmem:[%s4 + $0x8] sm:$0xff]
    %v176 = vld [vmem:[%s4 + $0x10] sm:$0xff]
    %v177 = vld [vmem:[%s4 + $0x18] sm:$0xff]
    %179 = vset.pattern.permute.xlu0 0
    %180 = vperm.xlu0 %179, %v174
    %v181 = vpop.permute.xlu0 %180
    %184 = vset.pattern.permute.xlu0 0
    %185 = vperm.xlu0 %184, %v175
    %v186 = vpop.permute.xlu0 %185
    %189 = vset.pattern.permute.xlu0 0
    %190 = vperm.xlu0 %189, %v176
    %v191 = vpop.permute.xlu0 %190
    %194 = vset.pattern.permute.xlu0 0
    %195 = vperm.xlu0 %194, %v177
    %v196 = vpop.permute.xlu0 %195
    %vm198 = vcmask 523264
    %v200 = vsel %vm198, %v170, 0
    %v203 = vsel %vm198, %v171, 0
    %v206 = vsel %vm198, %v172, 0
    %v209 = vsel %vm198, %v173, 0
    %211 = vmatpush.msra.mxu0 0.0
    %212 = vmatpush.msra.mxu0 0.0
    %213 = vmatpush.msra.mxu0 0.0
    %214 = vmatpush.msra.mxu0 0.0
    %215 = vmatpush.msra.mxu0 0.0
    %216 = vmatpush.msra.mxu0 0.0
    %217 = vmatpush.msra.mxu0 0.0
    %218 = vmatpush.msra.mxu0 0.0
    %219 = vmatpush.msra.mxu0 %v169
    %220 = vmatpush.msra.mxu0 %v168
    %221 = vmatpush.msra.mxu0 %v167
    %222 = vmatpush.msra.mxu0 %v166
    %223 = vmatpush.msra.mxu0 %v165
    %224 = vmatpush.msra.mxu0 %v164
    %225 = vmatpush.msra.mxu0 %v163
    %226 = vmatpush.msra.mxu0 %v162
    %227 = vmatmul.f32.gmra.mxu0 %v200
    %v228 = vpop.f32.mrf.mxu0
    %v229 = vadd.f32 %v181, %v228
    %230 = vmatmul.f32.gmra.mxu0 %v203
    %v231 = vpop.f32.mrf.mxu0
    %v232 = vadd.f32 %v186, %v231
    %233 = vmatmul.f32.gmra.mxu0 %v206
    %v234 = vpop.f32.mrf.mxu0
    %v235 = vadd.f32 %v191, %v234
    %236 = vmatmul.f32.gmra.mxu0 %v209
    %v237 = vpop.f32.mrf.mxu0
    %v238 = vadd.f32 %v196, %v237
    %239 = vdwg.mxu0
    %v240 = vmax.f32 %v229, 0.0
    %v241 = vmax.f32 %v232, 0.0
    %v242 = vmax.f32 %v235, 0.0
    %v243 = vmax.f32 %v238, 0.0
    %v244 = vld [vmem:[%s5] sm:$0xff]
    %v245 = vld [vmem:[%s5 + $0x8] sm:$0xff]
    %v246 = vld [vmem:[%s6] sm:$0xff]
    %v247 = vld [vmem:[%s6 + $0x8] sm:$0xff]
    %249 = vset.pattern.permute.xlu0 0
    %250 = vperm.xlu0 %249, %v246
    %v251 = vpop.permute.xlu0 %250
    %254 = vset.pattern.permute.xlu0 0
    %255 = vperm.xlu0 %254, %v247
    %v256 = vpop.permute.xlu0 %255
    %vm258 = vcmask 261120
    %v260 = vsel %vm258, %v244, 0
    %v263 = vsel %vm258, %v245, 0
    %265 = vmatpush.msra.mxu0 0.0
    %266 = vmatpush.msra.mxu0 0.0
    %267 = vmatpush.msra.mxu0 0.0
    %268 = vmatpush.msra.mxu0 0.0
    %269 = vmatpush.msra.mxu0 0.0
    %270 = vmatpush.msra.mxu0 0.0
    %271 = vmatpush.msra.mxu0 0.0
    %272 = vmatpush.msra.mxu0 0.0
    %273 = vmatpush.msra.mxu0 0.0
    %274 = vmatpush.msra.mxu0 0.0
    %275 = vmatpush.msra.mxu0 0.0
    %276 = vmatpush.msra.mxu0 0.0
    %277 = vmatpush.msra.mxu0 %v243
    %278 = vmatpush.msra.mxu0 %v242
    %279 = vmatpush.msra.mxu0 %v241
    %280 = vmatpush.msra.mxu0 %v240
    %281 = vmatmul.f32.gmra.mxu0 %v260
    %v282 = vpop.f32.mrf.mxu0
    %v283 = vadd.f32 %v251, %v282
    %284 = vmatmul.f32.gmra.mxu0 %v263
    %v285 = vpop.f32.mrf.mxu0
    %v286 = vadd.f32 %v256, %v285
    %287 = vdwg.mxu0
    %v288 = vmax.f32 %v283, 0.0
    %v289 = vmax.f32 %v286, 0.0
    %v290 = vld [vmem:[%s7] sm:$0x1]
    %v291 = vld [vmem:[#allocation2] sm:$0x1]
    %293 = vset.pattern.permute.xlu0 0
    %294 = vperm.xlu0 %293, %v291
    %v295 = vpop.permute.xlu0 %294
    %v297 = vperm.slane %v295, 0
    %vm298 = vcmask 130048
    %v300 = vsel %vm298, %v290, 0
    %302 = vmatpush.msra.mxu0 0.0
    %303 = vmatpush.msra.mxu0 0.0
    %304 = vmatpush.msra.mxu0 0.0
    %305 = vmatpush.msra.mxu0 0.0
    %306 = vmatpush.msra.mxu0 0.0
    %307 = vmatpush.msra.mxu0 0.0
    %308 = vmatpush.msra.mxu0 0.0
    %309 = vmatpush.msra.mxu0 0.0
    %310 = vmatpush.msra.mxu0 0.0
    %311 = vmatpush.msra.mxu0 0.0
    %312 = vmatpush.msra.mxu0 0.0
    %313 = vmatpush.msra.mxu0 0.0
    %314 = vmatpush.msra.mxu0 0.0
    %315 = vmatpush.msra.mxu0 0.0
    %316 = vmatpush.msra.mxu0 %v289
    %317 = vmatpush.msra.mxu0 %v288
    %318 = vmatmul.f32.gmra.mxu0 %v300
    %v319 = vpop.f32.mrf.mxu0
    %v320 = vadd.f32 %v297, %v319
    %321 = vdwg.mxu0
    %v322 = vsub.f32 0.0, %v320
    %v323 = vmul.f32 %v322, 1.442695
    %v324 = vpow.pop %v323
    %v325 = vadd.f32 %v324, 1.0
    %v326 = vrcp.pop %v325
    %v327 = vmul.f32 %v325, %v326
    %v328 = vsub.f32 1.0, %v327
    %v329 = vmul.f32 %v326, %v328
    %v330 = vadd.f32 %v326, %v329
    %vm331 = vweird.f32 %v325
    %vm332 = vweird.f32 %v326
    %vm333 = vmor %vm331, %vm332
    %v334 = vsel %vm333, %v326, %v330
    %v335 = vand.u32 2147483647, %v325
    %vm336 = vcmp.eq.f32.partialorder %v335, 8.507059e+37
    %v337 = vand.u32 %v325, 2147483648
    %v338 = vor.u32 1.1754944e-38, %v337
    %v339 = vsel %vm336, %v338, %v334
    %v340 = vmul.f32 1.0, %v339
    %vm341 = vcmask 8192
    %342 = vst.msk [vmem:[#allocation3] sm:$0x1] %vm341, %v340
    // Predicated region
    $region38: #{deep_mlp_forward.1} parent=1 // pred_check
      _
    $region39: #{deep_mlp_forward.1} parent=1 // pred_check_branch
      %344 = sbr.rel (0) target = $region41
    $region40: #{deep_mlp_forward.1} parent=1 // pred_region
      %346 = vsyncadd [#allocation4], 0
      %s348 = sshll.u32 [#allocation3], 4
      %s349 = int_to_ptr.vmem [resolvable:$true] %s348
      %s350 = sshll.u32 %s9, 4
      %s351 = int_to_ptr.hbm [resolvable:$true] %s350
      %353 = dma.vmem_to_hbm [thread:$0]  %s349, 16, %s351, [#allocation4]
    $region41: #{deep_mlp_forward.1} parent=1 // pred_fallthru
      _
    // Predicated region
    $region42: #{deep_mlp_forward.1} parent=1 // pred_check
      _
    $region43: #{deep_mlp_forward.1} parent=1 // pred_check_branch
      %355 = sbr.rel (0) target = $region45
    $region44: #{deep_mlp_forward.1} parent=1 // pred_region
      %357 = dma.done [#allocation4], 16
    $region45: #{deep_mlp_forward.1} parent=1 // pred_fallthru
      _
    %358 = vsyncpa [#allocation4], 1

</llo_original>
